<compile_context>
chip_gen: v7x
topology: tpu7x:2x2x1
jax: 0.10.0
libtpu: 0.0.40
codegen_flags: <defaults>
</compile_context>

<pallas_src>
import functools

import jax
import jax.numpy as jnp
import numpy as np
from jax import lax
from jax.experimental import pallas as pl
from jax.experimental.pallas import tpu as pltpu


_UNROLL_FULL_MAX = 16   # fully unroll the time loop up to this many steps


def _lstm_kernel(x_ref, wx_ref, b_ref, wh_ref, h0_ref, c0_ref, wp_ref, bp_ref,
                 gscale_ref, goff_ref, out_ref, xz_ref, *,
                 seq_length, input_dim, num_hidden, batch):
    """Whole-sequence LSTM recurrence + final linear projection, all in VMEM."""
    S, D, H, B = seq_length, input_dim, num_hidden, batch

    # ---- Hoisted input projection + bias for the whole sequence ------------
    # Fused gate layout along lanes: [g | i | f | o].  The 0.5 pre-scale of the
    # sigmoid gates is already folded into wx / b / wh, so one tanh per step
    # activates all four gates.
    x = x_ref[...]                                            # (S*B, D), time-major
    if D == 1:
        xz_ref[...] = x * wx_ref[...] + b_ref[...]            # VPU broadcast-mul
    else:
        xz_ref[...] = (jnp.dot(x, wx_ref[...], preferred_element_type=jnp.float32)
                       + b_ref[...])                          # (S*B, 4H)

    wh = wh_ref[...]                                          # (H, 4H) fused, loop-invariant
    gscale = gscale_ref[...]                                  # (1, 4H) post-tanh scale
    goff = goff_ref[...]                                      # (1, 4H) post-tanh offset

    # h_init / c_init are (1, H) learnable rows broadcast over the batch,
    # matching the (H, 1) params broadcasting over batch columns in torch.
    h = jnp.broadcast_to(h0_ref[...], (B, H))
    c = jnp.broadcast_to(c0_ref[...], (B, H))

    def step(lo, h, c):
        # One MXU matmul + one whole-vreg tanh + one FMA per step; gate
        # separation is 32-lane extracts (XLU work, hidden under MXU/EUP).
        z = xz_ref[pl.ds(lo, B), :] + jnp.dot(h, wh, preferred_element_type=jnp.float32)
        a = goff + gscale * jnp.tanh(z)                       # (B, 4H) = [g|i|f|o]
        g = a[:, :H]
        i = a[:, H:2 * H]
        f = a[:, 2 * H:3 * H]
        o = a[:, 3 * H:]
        c = g * i + c * f
        h = jnp.tanh(c) * o
        return h, c

    if S <= _UNROLL_FULL_MAX:
        # Full unroll: cross-step scheduler visibility (overlap MXU of t+1 with
        # EUP/VPU of t).  Static 8-aligned sublane slices when B % 8 == 0.
        for t in range(S):
            h, c = step(t * B, h, c)
    else:
        # Bounded unroll for long sequences: keeps the unrolled body + xz slab
        # from spilling past 64 vregs while retaining some overlap.
        def body(t, carry):
            return step(pl.multiple_of(t * B, B), *carry)
        h, c = lax.fori_loop(0, S, body, (h, c), unroll=4)

    # Lane-dense final projection: out is (B, C_pad), C_pad a multiple of 128,
    # so the store is an unmasked full-vreg vst.  pt = (wph @ ht + bp).T
    out_ref[...] = (jnp.dot(h, wp_ref[...], preferred_element_type=jnp.float32)
                    + bp_ref[...])


def prepare_params(params, *, num_hidden, num_classes):
    """One-time packing of the PyTorch-style parameters into kernel layout.

    Gate order along lanes is [g | i | f | o]; the i/f/o (sigmoid) columns of
    Wx, Wh, b are pre-scaled by 0.5 so a single tanh covers every gate
    (sigmoid(x) = 0.5 + 0.5 * tanh(x / 2)), with the post-tanh affine carried
    by gate_scale / gate_off.  Done once per parameter set."""
    H, C = num_hidden, num_classes
    c_pad = ((C + 127) // 128) * 128
    f32 = jnp.float32
    half = jnp.float32(0.5)

    wx = jnp.concatenate(
        [params["wgx"].T, half * params["wix"].T,
         half * params["wfx"].T, half * params["wox"].T], axis=-1).astype(f32)   # (D, 4H)
    b = jnp.concatenate(
        [params["bg"].reshape(1, H), half * params["bi"].reshape(1, H),
         half * params["bf"].reshape(1, H), half * params["bo"].reshape(1, H)],
        axis=-1).astype(f32)                                                      # (1, 4H)
    wh = jnp.concatenate(
        [params["wgh"].T, half * params["wih"].T,
         half * params["wfh"].T, half * params["woh"].T], axis=-1).astype(f32)    # (H, 4H)

    gate_scale = jnp.concatenate(
        [jnp.ones((1, H), f32), jnp.full((1, 3 * H), 0.5, f32)], axis=-1)         # (1, 4H)
    gate_off = jnp.concatenate(
        [jnp.zeros((1, H), f32), jnp.full((1, 3 * H), 0.5, f32)], axis=-1)        # (1, 4H)

    wp = jnp.zeros((H, c_pad), f32).at[:, :C].set(params["wph"].T)                # (H, C_pad)
    bp = jnp.zeros((1, c_pad), f32).at[:, :C].set(params["bp"].reshape(1, C))
    return {
        "wx": wx, "b": b, "wh": wh,
        "gate_scale": gate_scale, "gate_off": gate_off,
        "h0": params["h_init"].reshape(1, H).astype(f32),                         # (1, H)
        "c0": params["c_init"].reshape(1, H).astype(f32),                         # (1, H)
        "wp": wp, "bp": bp,
    }


def lstm_forward(x, prep, *, seq_length, input_dim, num_hidden, num_classes):
    """x: (batch, seq_length) float32 (input_dim == 1). Returns (batch, num_classes)."""
    B = x.shape[0]
    assert x.shape[1] == seq_length
    c_pad = prep["wp"].shape[1]

    # Time-major (S*B, D): step t is rows [t*B, (t+1)*B) — an 8-aligned sublane
    # block when B is a multiple of 8, so per-step slicing is free in-kernel.
    x_seq = x.astype(jnp.float32).T.reshape(seq_length * B, input_dim)

    kernel = functools.partial(
        _lstm_kernel, seq_length=seq_length, input_dim=input_dim,
        num_hidden=num_hidden, batch=B)

    vmem = pl.BlockSpec(memory_space=pltpu.MemorySpace.VMEM)
    out_pad = pl.pallas_call(
        kernel,
        out_shape=jax.ShapeDtypeStruct((B, c_pad), jnp.float32),
        in_specs=[vmem] * 10,
        out_specs=vmem,
        scratch_shapes=[pltpu.VMEM((seq_length * B, 4 * num_hidden), jnp.float32)],
    )(x_seq, prep["wx"], prep["b"], prep["wh"], prep["h0"], prep["c0"],
      prep["wp"], prep["bp"], prep["gate_scale"], prep["gate_off"])
    return out_pad[:, :num_classes]


def init_params(key, seq_length, input_dim, num_hidden, num_classes):
    ks = jax.random.split(key, 9)
    normal = lambda k, shape, std: std * jax.random.normal(k, shape, jnp.float32)
    H, D, C = num_hidden, input_dim, num_classes
    return {
        "wgx": normal(ks[0], (H, D), 1.0 / H),
        "wix": normal(ks[1], (H, D), 1.0 / H),
        "wfx": normal(ks[2], (H, D), 1.0 / H),
        "wox": normal(ks[3], (H, D), 1.0 / H),
        "wgh": normal(ks[4], (H, H), 1.0 / H),
        "wih": normal(ks[5], (H, H), 1.0 / H),
        "wfh": normal(ks[6], (H, H), 1.0 / H),
        "woh": normal(ks[7], (H, H), 1.0 / H),
        "bg": jnp.zeros((H, 1), jnp.float32),
        "bi": jnp.zeros((H, 1), jnp.float32),
        "bf": jnp.ones((H, 1), jnp.float32),
        "bo": jnp.zeros((H, 1), jnp.float32),
        "wph": normal(ks[8], (C, H), 1e-4),
        "bp": jnp.zeros((C, 1), jnp.float32),
        "h_init": jnp.zeros((H, 1), jnp.float32),
        "c_init": jnp.zeros((H, 1), jnp.float32),
    }


def lstm_reference(x, params, *, seq_length):
    """Pure-JAX mirror of the PyTorch forward (column-major state (H, B))."""
    B = x.shape[0]
    ht = jnp.broadcast_to(params["h_init"], (params["h_init"].shape[0], B))
    ct = jnp.broadcast_to(params["c_init"], (params["c_init"].shape[0], B))
    for i in range(seq_length):
        xt = x[:, i].reshape(1, B)                            # (D=1, B)
        gt = jnp.tanh(params["wgx"] @ xt + params["wgh"] @ ht + params["bg"])
        it = jax.nn.sigmoid(params["wix"] @ xt + params["wih"] @ ht + params["bi"])
        ft = jax.nn.sigmoid(params["wfx"] @ xt + params["wfh"] @ ht + params["bf"])
        ot = jax.nn.sigmoid(params["wox"] @ xt + params["woh"] @ ht + params["bo"])
        ct = gt * it + ct * ft
        ht = jnp.tanh(ct) * ot
    return (params["wph"] @ ht + params["bp"]).T              # (B, C)


if __name__ == "__main__":
    seq_length, input_dim, num_hidden, num_classes = 8, 1, 32, 10
    batch = 8

    key = jax.random.PRNGKey(0)
    k_params, k_x = jax.random.split(key)
    params = init_params(k_params, seq_length, input_dim, num_hidden, num_classes)
    prep = prepare_params(params, num_hidden=num_hidden, num_classes=num_classes)

    # Digit-like inputs in [0, 9], as in the palindrome task.
    x = jax.random.randint(k_x, (batch, seq_length), 0, 10).astype(jnp.float32)

    out = lstm_forward(x, prep, seq_length=seq_length, input_dim=input_dim,
                       num_hidden=num_hidden, num_classes=num_classes)
    out = jax.block_until_ready(out)

    ref = lstm_reference(x, params, seq_length=seq_length)
    np.testing.assert_allclose(np.asarray(out), np.asarray(ref),
                               rtol=1e-5, atol=1e-5)
    print("KERNEL_OK")
</pallas_src>

<mosaic_0001>
module attributes {stable_mosaic.version = 11 : i64} {
  func.func @_lstm_kernel(%arg0: memref<64x1xf32, #tpu.memory_space<vmem>>, %arg1: memref<1x128xf32, #tpu.memory_space<vmem>>, %arg2: memref<1x128xf32, #tpu.memory_space<vmem>>, %arg3: memref<32x128xf32, #tpu.memory_space<vmem>>, %arg4: memref<1x32xf32, #tpu.memory_space<vmem>>, %arg5: memref<1x32xf32, #tpu.memory_space<vmem>>, %arg6: memref<32x128xf32, #tpu.memory_space<vmem>>, %arg7: memref<1x128xf32, #tpu.memory_space<vmem>>, %arg8: memref<1x128xf32, #tpu.memory_space<vmem>>, %arg9: memref<1x128xf32, #tpu.memory_space<vmem>>, %arg10: memref<8x128xf32, #tpu.memory_space<vmem>>, %arg11: memref<64x128xf32, #tpu.memory_space<vmem>>) attributes {dimension_semantics = [], scalar_prefetch = 0 : i64, scratch_operands = 1 : i64, tpu.core_type = #tpu.core_type<tc>} {
    %c0 = arith.constant 0 : index
    %c0_0 = arith.constant 0 : index
    %0 = vector.load %arg0[%c0, %c0_0] : memref<64x1xf32, #tpu.memory_space<vmem>>, vector<64x1xf32>
    %c0_1 = arith.constant 0 : index
    %c0_2 = arith.constant 0 : index
    %1 = vector.load %arg1[%c0_1, %c0_2] : memref<1x128xf32, #tpu.memory_space<vmem>>, vector<1x128xf32>
    %2 = vector.broadcast %0 : vector<64x1xf32> to vector<64x128xf32>
    %3 = vector.broadcast %1 : vector<1x128xf32> to vector<64x128xf32>
    %4 = arith.mulf %2, %3 : vector<64x128xf32>
    %c0_3 = arith.constant 0 : index
    %c0_4 = arith.constant 0 : index
    %5 = vector.load %arg2[%c0_3, %c0_4] : memref<1x128xf32, #tpu.memory_space<vmem>>, vector<1x128xf32>
    %6 = vector.broadcast %5 : vector<1x128xf32> to vector<64x128xf32>
    %7 = arith.addf %4, %6 : vector<64x128xf32>
    %c0_5 = arith.constant 0 : index
    %c0_6 = arith.constant 0 : index
    %8 = vector.load %arg11[%c0_5, %c0_6] : memref<64x128xf32, #tpu.memory_space<vmem>>, vector<64x128xf32>
    tpu.vector_store %arg11[%c0_5, %c0_6], %7 {strides = array<i32>} : memref<64x128xf32, #tpu.memory_space<vmem>>, vector<64x128xf32>,
    %c0_7 = arith.constant 0 : index
    %c0_8 = arith.constant 0 : index
    %9 = vector.load %arg3[%c0_7, %c0_8] : memref<32x128xf32, #tpu.memory_space<vmem>>, vector<32x128xf32>
    %c0_9 = arith.constant 0 : index
    %c0_10 = arith.constant 0 : index
    %10 = vector.load %arg8[%c0_9, %c0_10] : memref<1x128xf32, #tpu.memory_space<vmem>>, vector<1x128xf32>
    %c0_11 = arith.constant 0 : index
    %c0_12 = arith.constant 0 : index
    %11 = vector.load %arg9[%c0_11, %c0_12] : memref<1x128xf32, #tpu.memory_space<vmem>>, vector<1x128xf32>
    %c0_13 = arith.constant 0 : index
    %c0_14 = arith.constant 0 : index
    %12 = vector.load %arg4[%c0_13, %c0_14] : memref<1x32xf32, #tpu.memory_space<vmem>>, vector<1x32xf32>
    %13 = vector.shape_cast %12 : vector<1x32xf32> to vector<1x32xf32>
    %14 = vector.broadcast %13 : vector<1x32xf32> to vector<8x32xf32>
    %c0_15 = arith.constant 0 : index
    %c0_16 = arith.constant 0 : index
    %15 = vector.load %arg5[%c0_15, %c0_16] : memref<1x32xf32, #tpu.memory_space<vmem>>, vector<1x32xf32>
    %16 = vector.shape_cast %15 : vector<1x32xf32> to vector<1x32xf32>
    %17 = vector.broadcast %16 : vector<1x32xf32> to vector<8x32xf32>
    %c0_17 = arith.constant 0 : index
    %c0_18 = arith.constant 0 : index
    %18 = vector.load %arg11[%c0_17, %c0_18] : memref<64x128xf32, #tpu.memory_space<vmem>>, vector<8x128xf32>
    %cst = arith.constant dense<0.000000e+00> : vector<8x128xf32>
    %19 = tpu.matmul %14, %9, %cst {dimension_numbers = #tpu.dot_dimension_numbers<[1], [0], [0], [1], [0, 0, 1, 1], [], []>} : vector<8x32xf32>, vector<32x128xf32>, vector<8x128xf32> -> vector<8x128xf32>
    %20 = arith.addf %18, %19 : vector<8x128xf32>
    %21 = math.tanh %20 : vector<8x128xf32>
    %22 = vector.broadcast %10 : vector<1x128xf32> to vector<8x128xf32>
    %23 = arith.mulf %22, %21 : vector<8x128xf32>
    %24 = vector.broadcast %11 : vector<1x128xf32> to vector<8x128xf32>
    %25 = arith.addf %24, %23 : vector<8x128xf32>
    %26 = vector.extract_strided_slice %25 {offsets = [0, 0], sizes = [8, 32], strides = [1, 1]} : vector<8x128xf32> to vector<8x32xf32>
    %27 = vector.extract_strided_slice %25 {offsets = [0, 32], sizes = [8, 32], strides = [1, 1]} : vector<8x128xf32> to vector<8x32xf32>
    %28 = vector.extract_strided_slice %25 {offsets = [0, 64], sizes = [8, 32], strides = [1, 1]} : vector<8x128xf32> to vector<8x32xf32>
    %29 = vector.extract_strided_slice %25 {offsets = [0, 96], sizes = [8, 32], strides = [1, 1]} : vector<8x128xf32> to vector<8x32xf32>
    %30 = arith.mulf %26, %27 : vector<8x32xf32>
    %31 = arith.mulf %17, %28 : vector<8x32xf32>
    %32 = arith.addf %30, %31 : vector<8x32xf32>
    %33 = math.tanh %32 : vector<8x32xf32>
    %34 = arith.mulf %33, %29 : vector<8x32xf32>
    %c8 = arith.constant 8 : index
    %c0_19 = arith.constant 0 : index
    %35 = vector.load %arg11[%c8, %c0_19] : memref<64x128xf32, #tpu.memory_space<vmem>>, vector<8x128xf32>
    %cst_20 = arith.constant dense<0.000000e+00> : vector<8x128xf32>
    %36 = tpu.matmul %34, %9, %cst_20 {dimension_numbers = #tpu.dot_dimension_numbers<[1], [0], [0], [1], [0, 0, 1, 1], [], []>} : vector<8x32xf32>, vector<32x128xf32>, vector<8x128xf32> -> vector<8x128xf32>
    %37 = arith.addf %35, %36 : vector<8x128xf32>
    %38 = math.tanh %37 : vector<8x128xf32>
    %39 = vector.broadcast %10 : vector<1x128xf32> to vector<8x128xf32>
    %40 = arith.mulf %39, %38 : vector<8x128xf32>
    %41 = vector.broadcast %11 : vector<1x128xf32> to vector<8x128xf32>
    %42 = arith.addf %41, %40 : vector<8x128xf32>
    %43 = vector.extract_strided_slice %42 {offsets = [0, 0], sizes = [8, 32], strides = [1, 1]} : vector<8x128xf32> to vector<8x32xf32>
    %44 = vector.extract_strided_slice %42 {offsets = [0, 32], sizes = [8, 32], strides = [1, 1]} : vector<8x128xf32> to vector<8x32xf32>
    %45 = vector.extract_strided_slice %42 {offsets = [0, 64], sizes = [8, 32], strides = [1, 1]} : vector<8x128xf32> to vector<8x32xf32>
    %46 = vector.extract_strided_slice %42 {offsets = [0, 96], sizes = [8, 32], strides = [1, 1]} : vector<8x128xf32> to vector<8x32xf32>
    %47 = arith.mulf %43, %44 : vector<8x32xf32>
    %48 = arith.mulf %32, %45 : vector<8x32xf32>
    %49 = arith.addf %47, %48 : vector<8x32xf32>
    %50 = math.tanh %49 : vector<8x32xf32>
    %51 = arith.mulf %50, %46 : vector<8x32xf32>
    %c16 = arith.constant 16 : index
    %c0_21 = arith.constant 0 : index
    %52 = vector.load %arg11[%c16, %c0_21] : memref<64x128xf32, #tpu.memory_space<vmem>>, vector<8x128xf32>
    %cst_22 = arith.constant dense<0.000000e+00> : vector<8x128xf32>
    %53 = tpu.matmul %51, %9, %cst_22 {dimension_numbers = #tpu.dot_dimension_numbers<[1], [0], [0], [1], [0, 0, 1, 1], [], []>} : vector<8x32xf32>, vector<32x128xf32>, vector<8x128xf32> -> vector<8x128xf32>
    %54 = arith.addf %52, %53 : vector<8x128xf32>
    %55 = math.tanh %54 : vector<8x128xf32>
    %56 = vector.broadcast %10 : vector<1x128xf32> to vector<8x128xf32>
    %57 = arith.mulf %56, %55 : vector<8x128xf32>
    %58 = vector.broadcast %11 : vector<1x128xf32> to vector<8x128xf32>
    %59 = arith.addf %58, %57 : vector<8x128xf32>
    %60 = vector.extract_strided_slice %59 {offsets = [0, 0], sizes = [8, 32], strides = [1, 1]} : vector<8x128xf32> to vector<8x32xf32>
    %61 = vector.extract_strided_slice %59 {offsets = [0, 32], sizes = [8, 32], strides = [1, 1]} : vector<8x128xf32> to vector<8x32xf32>
    %62 = vector.extract_strided_slice %59 {offsets = [0, 64], sizes = [8, 32], strides = [1, 1]} : vector<8x128xf32> to vector<8x32xf32>
    %63 = vector.extract_strided_slice %59 {offsets = [0, 96], sizes = [8, 32], strides = [1, 1]} : vector<8x128xf32> to vector<8x32xf32>
    %64 = arith.mulf %60, %61 : vector<8x32xf32>
    %65 = arith.mulf %49, %62 : vector<8x32xf32>
    %66 = arith.addf %64, %65 : vector<8x32xf32>
    %67 = math.tanh %66 : vector<8x32xf32>
    %68 = arith.mulf %67, %63 : vector<8x32xf32>
    %c24 = arith.constant 24 : index
    %c0_23 = arith.constant 0 : index
    %69 = vector.load %arg11[%c24, %c0_23] : memref<64x128xf32, #tpu.memory_space<vmem>>, vector<8x128xf32>
    %cst_24 = arith.constant dense<0.000000e+00> : vector<8x128xf32>
    %70 = tpu.matmul %68, %9, %cst_24 {dimension_numbers = #tpu.dot_dimension_numbers<[1], [0], [0], [1], [0, 0, 1, 1], [], []>} : vector<8x32xf32>, vector<32x128xf32>, vector<8x128xf32> -> vector<8x128xf32>
    %71 = arith.addf %69, %70 : vector<8x128xf32>
    %72 = math.tanh %71 : vector<8x128xf32>
    %73 = vector.broadcast %10 : vector<1x128xf32> to vector<8x128xf32>
    %74 = arith.mulf %73, %72 : vector<8x128xf32>
    %75 = vector.broadcast %11 : vector<1x128xf32> to vector<8x128xf32>
    %76 = arith.addf %75, %74 : vector<8x128xf32>
    %77 = vector.extract_strided_slice %76 {offsets = [0, 0], sizes = [8, 32], strides = [1, 1]} : vector<8x128xf32> to vector<8x32xf32>
    %78 = vector.extract_strided_slice %76 {offsets = [0, 32], sizes = [8, 32], strides = [1, 1]} : vector<8x128xf32> to vector<8x32xf32>
    %79 = vector.extract_strided_slice %76 {offsets = [0, 64], sizes = [8, 32], strides = [1, 1]} : vector<8x128xf32> to vector<8x32xf32>
    %80 = vector.extract_strided_slice %76 {offsets = [0, 96], sizes = [8, 32], strides = [1, 1]} : vector<8x128xf32> to vector<8x32xf32>
    %81 = arith.mulf %77, %78 : vector<8x32xf32>
    %82 = arith.mulf %66, %79 : vector<8x32xf32>
    %83 = arith.addf %81, %82 : vector<8x32xf32>
    %84 = math.tanh %83 : vector<8x32xf32>
    %85 = arith.mulf %84, %80 : vector<8x32xf32>
    %c32 = arith.constant 32 : index
    %c0_25 = arith.constant 0 : index
    %86 = vector.load %arg11[%c32, %c0_25] : memref<64x128xf32, #tpu.memory_space<vmem>>, vector<8x128xf32>
    %cst_26 = arith.constant dense<0.000000e+00> : vector<8x128xf32>
    %87 = tpu.matmul %85, %9, %cst_26 {dimension_numbers = #tpu.dot_dimension_numbers<[1], [0], [0], [1], [0, 0, 1, 1], [], []>} : vector<8x32xf32>, vector<32x128xf32>, vector<8x128xf32> -> vector<8x128xf32>
    %88 = arith.addf %86, %87 : vector<8x128xf32>
    %89 = math.tanh %88 : vector<8x128xf32>
    %90 = vector.broadcast %10 : vector<1x128xf32> to vector<8x128xf32>
    %91 = arith.mulf %90, %89 : vector<8x128xf32>
    %92 = vector.broadcast %11 : vector<1x128xf32> to vector<8x128xf32>
    %93 = arith.addf %92, %91 : vector<8x128xf32>
    %94 = vector.extract_strided_slice %93 {offsets = [0, 0], sizes = [8, 32], strides = [1, 1]} : vector<8x128xf32> to vector<8x32xf32>
    %95 = vector.extract_strided_slice %93 {offsets = [0, 32], sizes = [8, 32], strides = [1, 1]} : vector<8x128xf32> to vector<8x32xf32>
    %96 = vector.extract_strided_slice %93 {offsets = [0, 64], sizes = [8, 32], strides = [1, 1]} : vector<8x128xf32> to vector<8x32xf32>
    %97 = vector.extract_strided_slice %93 {offsets = [0, 96], sizes = [8, 32], strides = [1, 1]} : vector<8x128xf32> to vector<8x32xf32>
    %98 = arith.mulf %94, %95 : vector<8x32xf32>
    %99 = arith.mulf %83, %96 : vector<8x32xf32>
    %100 = arith.addf %98, %99 : vector<8x32xf32>
    %101 = math.tanh %100 : vector<8x32xf32>
    %102 = arith.mulf %101, %97 : vector<8x32xf32>
    %c40 = arith.constant 40 : index
    %c0_27 = arith.constant 0 : index
    %103 = vector.load %arg11[%c40, %c0_27] : memref<64x128xf32, #tpu.memory_space<vmem>>, vector<8x128xf32>
    %cst_28 = arith.constant dense<0.000000e+00> : vector<8x128xf32>
    %104 = tpu.matmul %102, %9, %cst_28 {dimension_numbers = #tpu.dot_dimension_numbers<[1], [0], [0], [1], [0, 0, 1, 1], [], []>} : vector<8x32xf32>, vector<32x128xf32>, vector<8x128xf32> -> vector<8x128xf32>
    %105 = arith.addf %103, %104 : vector<8x128xf32>
    %106 = math.tanh %105 : vector<8x128xf32>
    %107 = vector.broadcast %10 : vector<1x128xf32> to vector<8x128xf32>
    %108 = arith.mulf %107, %106 : vector<8x128xf32>
    %109 = vector.broadcast %11 : vector<1x128xf32> to vector<8x128xf32>
    %110 = arith.addf %109, %108 : vector<8x128xf32>
    %111 = vector.extract_strided_slice %110 {offsets = [0, 0], sizes = [8, 32], strides = [1, 1]} : vector<8x128xf32> to vector<8x32xf32>
    %112 = vector.extract_strided_slice %110 {offsets = [0, 32], sizes = [8, 32], strides = [1, 1]} : vector<8x128xf32> to vector<8x32xf32>
    %113 = vector.extract_strided_slice %110 {offsets = [0, 64], sizes = [8, 32], strides = [1, 1]} : vector<8x128xf32> to vector<8x32xf32>
    %114 = vector.extract_strided_slice %110 {offsets = [0, 96], sizes = [8, 32], strides = [1, 1]} : vector<8x128xf32> to vector<8x32xf32>
    %115 = arith.mulf %111, %112 : vector<8x32xf32>
    %116 = arith.mulf %100, %113 : vector<8x32xf32>
    %117 = arith.addf %115, %116 : vector<8x32xf32>
    %118 = math.tanh %117 : vector<8x32xf32>
    %119 = arith.mulf %118, %114 : vector<8x32xf32>
    %c48 = arith.constant 48 : index
    %c0_29 = arith.constant 0 : index
    %120 = vector.load %arg11[%c48, %c0_29] : memref<64x128xf32, #tpu.memory_space<vmem>>, vector<8x128xf32>
    %cst_30 = arith.constant dense<0.000000e+00> : vector<8x128xf32>
    %121 = tpu.matmul %119, %9, %cst_30 {dimension_numbers = #tpu.dot_dimension_numbers<[1], [0], [0], [1], [0, 0, 1, 1], [], []>} : vector<8x32xf32>, vector<32x128xf32>, vector<8x128xf32> -> vector<8x128xf32>
    %122 = arith.addf %120, %121 : vector<8x128xf32>
    %123 = math.tanh %122 : vector<8x128xf32>
    %124 = vector.broadcast %10 : vector<1x128xf32> to vector<8x128xf32>
    %125 = arith.mulf %124, %123 : vector<8x128xf32>
    %126 = vector.broadcast %11 : vector<1x128xf32> to vector<8x128xf32>
    %127 = arith.addf %126, %125 : vector<8x128xf32>
    %128 = vector.extract_strided_slice %127 {offsets = [0, 0], sizes = [8, 32], strides = [1, 1]} : vector<8x128xf32> to vector<8x32xf32>
    %129 = vector.extract_strided_slice %127 {offsets = [0, 32], sizes = [8, 32], strides = [1, 1]} : vector<8x128xf32> to vector<8x32xf32>
    %130 = vector.extract_strided_slice %127 {offsets = [0, 64], sizes = [8, 32], strides = [1, 1]} : vector<8x128xf32> to vector<8x32xf32>
    %131 = vector.extract_strided_slice %127 {offsets = [0, 96], sizes = [8, 32], strides = [1, 1]} : vector<8x128xf32> to vector<8x32xf32>
    %132 = arith.mulf %128, %129 : vector<8x32xf32>
    %133 = arith.mulf %117, %130 : vector<8x32xf32>
    %134 = arith.addf %132, %133 : vector<8x32xf32>
    %135 = math.tanh %134 : vector<8x32xf32>
    %136 = arith.mulf %135, %131 : vector<8x32xf32>
    %c56 = arith.constant 56 : index
    %c0_31 = arith.constant 0 : index
    %137 = vector.load %arg11[%c56, %c0_31] : memref<64x128xf32, #tpu.memory_space<vmem>>, vector<8x128xf32>
    %cst_32 = arith.constant dense<0.000000e+00> : vector<8x128xf32>
    %138 = tpu.matmul %136, %9, %cst_32 {dimension_numbers = #tpu.dot_dimension_numbers<[1], [0], [0], [1], [0, 0, 1, 1], [], []>} : vector<8x32xf32>, vector<32x128xf32>, vector<8x128xf32> -> vector<8x128xf32>
    %139 = arith.addf %137, %138 : vector<8x128xf32>
    %140 = math.tanh %139 : vector<8x128xf32>
    %141 = vector.broadcast %10 : vector<1x128xf32> to vector<8x128xf32>
    %142 = arith.mulf %141, %140 : vector<8x128xf32>
    %143 = vector.broadcast %11 : vector<1x128xf32> to vector<8x128xf32>
    %144 = arith.addf %143, %142 : vector<8x128xf32>
    %145 = vector.extract_strided_slice %144 {offsets = [0, 0], sizes = [8, 32], strides = [1, 1]} : vector<8x128xf32> to vector<8x32xf32>
    %146 = vector.extract_strided_slice %144 {offsets = [0, 32], sizes = [8, 32], strides = [1, 1]} : vector<8x128xf32> to vector<8x32xf32>
    %147 = vector.extract_strided_slice %144 {offsets = [0, 64], sizes = [8, 32], strides = [1, 1]} : vector<8x128xf32> to vector<8x32xf32>
    %148 = vector.extract_strided_slice %144 {offsets = [0, 96], sizes = [8, 32], strides = [1, 1]} : vector<8x128xf32> to vector<8x32xf32>
    %149 = arith.mulf %145, %146 : vector<8x32xf32>
    %150 = arith.mulf %134, %147 : vector<8x32xf32>
    %151 = arith.addf %149, %150 : vector<8x32xf32>
    %152 = math.tanh %151 : vector<8x32xf32>
    %153 = arith.mulf %152, %148 : vector<8x32xf32>
    %c0_33 = arith.constant 0 : index
    %c0_34 = arith.constant 0 : index
    %154 = vector.load %arg6[%c0_33, %c0_34] : memref<32x128xf32, #tpu.memory_space<vmem>>, vector<32x128xf32>
    %cst_35 = arith.constant dense<0.000000e+00> : vector<8x128xf32>
    %155 = tpu.matmul %153, %154, %cst_35 {dimension_numbers = #tpu.dot_dimension_numbers<[1], [0], [0], [1], [0, 0, 1, 1], [], []>} : vector<8x32xf32>, vector<32x128xf32>, vector<8x128xf32> -> vector<8x128xf32>
    %c0_36 = arith.constant 0 : index
    %c0_37 = arith.constant 0 : index
    %156 = vector.load %arg7[%c0_36, %c0_37] : memref<1x128xf32, #tpu.memory_space<vmem>>, vector<1x128xf32>
    %157 = vector.broadcast %156 : vector<1x128xf32> to vector<8x128xf32>
    %158 = arith.addf %155, %157 : vector<8x128xf32>
    %c0_38 = arith.constant 0 : index
    %c0_39 = arith.constant 0 : index
    %159 = vector.load %arg10[%c0_38, %c0_39] : memref<8x128xf32, #tpu.memory_space<vmem>>, vector<8x128xf32>
    tpu.vector_store %arg10[%c0_38, %c0_39], %158 {strides = array<i32>} : memref<8x128xf32, #tpu.memory_space<vmem>>, vector<8x128xf32>,
    return
  }
}

</mosaic_0001>

<llo_original>
// kernel: tpu_custom_call.1
$region0: #{tpu_custom_call.1}
  #allocation0 [shape = 'u32[]', space=smem, size = 0x4, offset = 0x4, fixed_abs, tag = 'smem constant byte address 0x4 - core index']
  #allocation1 [shape = 'u32[144,128]{1,0:T(1,128)}', space=vmem, size = 0x12000, scoped, tag = 'internal scratch']
  #allocation2 [shape = 'f32[64,128]{1,0:T(8,128)}', space=vmem, size = 0x8000, scoped, tag = 'scratch operand']
  %s0 = inlined_call_operand.vmem [shape: f32[64,1], index: 0, kind: input, shape index: {}]
  %s1 = inlined_call_operand.vmem [shape: f32[1,128], index: 1, kind: input, shape index: {}]
  %s2 = inlined_call_operand.vmem [shape: f32[1,128], index: 2, kind: input, shape index: {}]
  %s3 = inlined_call_operand.vmem [shape: f32[32,128], index: 3, kind: input, shape index: {}]
  %s4 = inlined_call_operand.vmem [shape: f32[1,32], index: 4, kind: input, shape index: {}]
  %s5 = inlined_call_operand.vmem [shape: f32[1,32], index: 5, kind: input, shape index: {}]
  %s6 = inlined_call_operand.vmem [shape: f32[32,128], index: 6, kind: input, shape index: {}]
  %s7 = inlined_call_operand.vmem [shape: f32[1,128], index: 7, kind: input, shape index: {}]
  %s8 = inlined_call_operand.vmem [shape: f32[1,128], index: 8, kind: input, shape index: {}]
  %s9 = inlined_call_operand.vmem [shape: f32[1,128], index: 9, kind: input, shape index: {}]
  %s10 = inlined_call_operand.hbm [shape: f32[8,128], index: 10, kind: output, shape index: {}]
  %s11 = sld [smem:[#allocation0]]
  $region50: #{tpu_custom_call.1} parent=0
    _
  %s13 = ssub.s32 1, %s11
  %s14 = scalar_select 0, %s13, %s11
  $region1: #{tpu_custom_call.1} parent=0
    #allocation3 [shape = 'u8[4096]{0}', space=vmem, size = 0x1000, scoped, tag = 'output window, operand 0, single buffered']
    #allocation4 [shape = 's32[1]{0}', space=sflag, size = 0x4, scoped, tag = 'scoped memory for tpu_custom_call.1']
    %15 = vsyncpa [#allocation4], 0
    // Predicated region
    $region2: #{tpu_custom_call.1} parent=1 // pred_check
      _
    $region3: #{tpu_custom_call.1} parent=1 // pred_check_branch
      %17 = sbr.rel (0) target = $region5
    $region4: #{tpu_custom_call.1} parent=1 // pred_region
      _
    $region5: #{tpu_custom_call.1} parent=1 // pred_fallthru
      _
    // Predicated region
    $region6: #{tpu_custom_call.1} parent=1 // pred_check
      _
    $region7: #{tpu_custom_call.1} parent=1 // pred_check_branch
      %19 = sbr.rel (0) target = $region9
    $region8: #{tpu_custom_call.1} parent=1 // pred_region
      _
    $region9: #{tpu_custom_call.1} parent=1 // pred_fallthru
      _
    // Predicated region
    $region10: #{tpu_custom_call.1} parent=1 // pred_check
      _
    $region11: #{tpu_custom_call.1} parent=1 // pred_check_branch
      %21 = sbr.rel (0) target = $region13
    $region12: #{tpu_custom_call.1} parent=1 // pred_region
      _
    $region13: #{tpu_custom_call.1} parent=1 // pred_fallthru
      _
    // Predicated region
    $region14: #{tpu_custom_call.1} parent=1 // pred_check
      _
    $region15: #{tpu_custom_call.1} parent=1 // pred_check_branch
      %23 = sbr.rel (0) target = $region17
    $region16: #{tpu_custom_call.1} parent=1 // pred_region
      _
    $region17: #{tpu_custom_call.1} parent=1 // pred_fallthru
      _
    // Predicated region
    $region18: #{tpu_custom_call.1} parent=1 // pred_check
      _
    $region19: #{tpu_custom_call.1} parent=1 // pred_check_branch
      %25 = sbr.rel (0) target = $region21
    $region20: #{tpu_custom_call.1} parent=1 // pred_region
      _
    $region21: #{tpu_custom_call.1} parent=1 // pred_fallthru
      _
    // Predicated region
    $region22: #{tpu_custom_call.1} parent=1 // pred_check
      _
    $region23: #{tpu_custom_call.1} parent=1 // pred_check_branch
      %27 = sbr.rel (0) target = $region25
    $region24: #{tpu_custom_call.1} parent=1 // pred_region
      _
    $region25: #{tpu_custom_call.1} parent=1 // pred_fallthru
      _
    // Predicated region
    $region26: #{tpu_custom_call.1} parent=1 // pred_check
      _
    $region27: #{tpu_custom_call.1} parent=1 // pred_check_branch
      %29 = sbr.rel (0) target = $region29
    $region28: #{tpu_custom_call.1} parent=1 // pred_region
      _
    $region29: #{tpu_custom_call.1} parent=1 // pred_fallthru
      _
    // Predicated region
    $region30: #{tpu_custom_call.1} parent=1 // pred_check
      _
    $region31: #{tpu_custom_call.1} parent=1 // pred_check_branch
      %31 = sbr.rel (0) target = $region33
    $region32: #{tpu_custom_call.1} parent=1 // pred_region
      _
    $region33: #{tpu_custom_call.1} parent=1 // pred_fallthru
      _
    // Predicated region
    $region34: #{tpu_custom_call.1} parent=1 // pred_check
      _
    $region35: #{tpu_custom_call.1} parent=1 // pred_check_branch
      %33 = sbr.rel (0) target = $region37
    $region36: #{tpu_custom_call.1} parent=1 // pred_region
      _
    $region37: #{tpu_custom_call.1} parent=1 // pred_fallthru
      _
    // Predicated region
    $region38: #{tpu_custom_call.1} parent=1 // pred_check
      _
    $region39: #{tpu_custom_call.1} parent=1 // pred_check_branch
      %35 = sbr.rel (0) target = $region41
    $region40: #{tpu_custom_call.1} parent=1 // pred_region
      _
    $region41: #{tpu_custom_call.1} parent=1 // pred_fallthru
      _
    %v36 = vld [vmem:[%s0] sm:$0xff]
    %v37 = vld [vmem:[%s0 + $0x8] sm:$0xff]
    %v38 = vld [vmem:[%s0 + $0x10] sm:$0xff]
    %v39 = vld [vmem:[%s0 + $0x18] sm:$0xff]
    %v40 = vld [vmem:[%s0 + $0x20] sm:$0xff]
    %v41 = vld [vmem:[%s0 + $0x28] sm:$0xff]
    %v42 = vld [vmem:[%s0 + $0x30] sm:$0xff]
    %v43 = vld [vmem:[%s0 + $0x38] sm:$0xff]
    %v44 = vld [vmem:[%s1] sm:$0x1]
    %46 = vset.pattern.permute.xlu0 0
    %47 = vperm.xlu0 %46, %v36
    %v48 = vpop.permute.xlu0 %47
    %51 = vset.pattern.permute.xlu0 0
    %52 = vperm.xlu0 %51, %v37
    %v53 = vpop.permute.xlu0 %52
    %56 = vset.pattern.permute.xlu0 0
    %57 = vperm.xlu0 %56, %v38
    %v58 = vpop.permute.xlu0 %57
    %61 = vset.pattern.permute.xlu0 0
    %62 = vperm.xlu0 %61, %v39
    %v63 = vpop.permute.xlu0 %62
    %66 = vset.pattern.permute.xlu0 0
    %67 = vperm.xlu0 %66, %v40
    %v68 = vpop.permute.xlu0 %67
    %71 = vset.pattern.permute.xlu0 0
    %72 = vperm.xlu0 %71, %v41
    %v73 = vpop.permute.xlu0 %72
    %76 = vset.pattern.permute.xlu0 0
    %77 = vperm.xlu0 %76, %v42
    %v78 = vpop.permute.xlu0 %77
    %81 = vset.pattern.permute.xlu0 0
    %82 = vperm.xlu0 %81, %v43
    %v83 = vpop.permute.xlu0 %82
    %v86 = vlaneseq
    %v87 = vshrl.u32 %v86, 7
    %v88 = vsub.s32 0, %v87
    %v89 = vrot.slane %v44, %v88
    %v91 = vmul.f32 %v48, %v89
    %v92 = vmul.f32 %v53, %v89
    %v93 = vmul.f32 %v58, %v89
    %v94 = vmul.f32 %v63, %v89
    %v95 = vmul.f32 %v68, %v89
    %v96 = vmul.f32 %v73, %v89
    %v97 = vmul.f32 %v78, %v89
    %v98 = vmul.f32 %v83, %v89
    %v99 = vld [vmem:[%s2] sm:$0x1]
    %v101 = vlaneseq
    %v102 = vshrl.u32 %v101, 7
    %v103 = vsub.s32 0, %v102
    %v104 = vrot.slane %v99, %v103
    %v106 = vadd.f32 %v91, %v104
    %v107 = vadd.f32 %v92, %v104
    %v108 = vadd.f32 %v93, %v104
    %v109 = vadd.f32 %v94, %v104
    %v110 = vadd.f32 %v95, %v104
    %v111 = vadd.f32 %v96, %v104
    %v112 = vadd.f32 %v97, %v104
    %v113 = vadd.f32 %v98, %v104
    %114 = vst [vmem:[#allocation2] sm:$0xff] %v106
    %115 = vst [vmem:[#allocation2 + $0x8] sm:$0xff] %v107
    %116 = vst [vmem:[#allocation2 + $0x10] sm:$0xff] %v108
    %117 = vst [vmem:[#allocation2 + $0x18] sm:$0xff] %v109
    %118 = vst [vmem:[#allocation2 + $0x20] sm:$0xff] %v110
    %119 = vst [vmem:[#allocation2 + $0x28] sm:$0xff] %v111
    %120 = vst [vmem:[#allocation2 + $0x30] sm:$0xff] %v112
    %121 = vst [vmem:[#allocation2 + $0x38] sm:$0xff] %v113
    %v122 = vld [vmem:[%s3] sm:$0xff]
    %v123 = vld [vmem:[%s3 + $0x8] sm:$0xff]
    %v124 = vld [vmem:[%s3 + $0x10] sm:$0xff]
    %v125 = vld [vmem:[%s3 + $0x18] sm:$0xff]
    %v126 = vld [vmem:[%s8] sm:$0x1]
    %v127 = vld [vmem:[%s9] sm:$0x1]
    %v128 = vld [vmem:[%s4] sm:$0x1]
    %v130 = vlaneseq
    %v131 = vshrl.u32 %v130, 7
    %v132 = vsub.s32 0, %v131
    %v133 = vrot.slane %v128, %v132
    %v134 = vld [vmem:[%s5] sm:$0x1]
    %v136 = vlaneseq
    %v137 = vshrl.u32 %v136, 7
    %v138 = vsub.s32 0, %v137
    %v139 = vrot.slane %v134, %v138
    %v141 = vld [vmem:[#allocation2] sm:$0xff]
    %vm142 = vcmask 261120
    %v143 = vsel %vm142, %v133, 0
    %145 = vmatprep.subr.mxu0 0.0
    %146 = vmatpush1.msra.mxu0 %v122
    %147 = vmatprep.subr.mxu0 0.0
    %148 = vmatpush1.msra.mxu0 %v123
    %149 = vmatprep.subr.mxu0 0.0
    %150 = vmatpush1.msra.mxu0 %v124
    %151 = vmatprep.subr.mxu0 0.0
    %152 = vmatpush1.msra.mxu0 %v125
    %153 = vmatprep.subr.mxu0 0.0
    %154 = vmatpush1.msra.mxu0 0.0
    %155 = vmatprep.subr.mxu0 0.0
    %156 = vmatpush1.msra.mxu0 0.0
    %157 = vmatprep.subr.mxu0 0.0
    %158 = vmatpush1.msra.mxu0 0.0
    %159 = vmatprep.subr.mxu0 0.0
    %160 = vmatpush1.msra.mxu0 0.0
    %161 = vmatprep.subr.mxu0 0.0
    %162 = vmatpush1.msra.mxu0 0.0
    %163 = vmatprep.subr.mxu0 0.0
    %164 = vmatpush1.msra.mxu0 0.0
    %165 = vmatprep.subr.mxu0 0.0
    %166 = vmatpush1.msra.mxu0 0.0
    %167 = vmatprep.subr.mxu0 0.0
    %168 = vmatpush1.msra.mxu0 0.0
    %169 = vmatprep.subr.mxu0 0.0
    %170 = vmatpush1.msra.mxu0 0.0
    %171 = vmatprep.subr.mxu0 0.0
    %172 = vmatpush1.msra.mxu0 0.0
    %173 = vmatprep.subr.mxu0 0.0
    %174 = vmatpush1.msra.mxu0 0.0
    %175 = vmatprep.subr.mxu0 0.0
    %176 = vmatpush1.msra.mxu0 0.0
    %177 = vmatprep.subr.mxu0 0.0
    %178 = vmatpush1.msra.mxu0 0.0
    %179 = vmatprep.subr.mxu0 0.0
    %180 = vmatpush1.msra.mxu0 0.0
    %181 = vmatprep.subr.mxu0 0.0
    %182 = vmatpush1.msra.mxu0 0.0
    %183 = vmatprep.subr.mxu0 0.0
    %184 = vmatpush1.msra.mxu0 0.0
    %185 = vmatprep.subr.mxu0 0.0
    %186 = vmatpush1.msra.mxu0 0.0
    %187 = vmatprep.subr.mxu0 0.0
    %188 = vmatpush1.msra.mxu0 0.0
    %189 = vmatprep.subr.mxu0 0.0
    %190 = vmatpush1.msra.mxu0 0.0
    %191 = vmatprep.subr.mxu0 0.0
    %192 = vmatpush1.msra.mxu0 0.0
    %193 = vmatprep.subr.mxu0 0.0
    %194 = vmatpush1.msra.mxu0 0.0
    %195 = vmatprep.subr.mxu0 0.0
    %196 = vmatpush1.msra.mxu0 0.0
    %197 = vmatprep.subr.mxu0 0.0
    %198 = vmatpush1.msra.mxu0 0.0
    %199 = vmatprep.subr.mxu0 0.0
    %200 = vmatpush1.msra.mxu0 0.0
    %201 = vmatprep.subr.mxu0 0.0
    %202 = vmatpush1.msra.mxu0 0.0
    %203 = vmatprep.subr.mxu0 0.0
    %204 = vmatpush1.msra.mxu0 0.0
    %205 = vmatprep.subr.mxu0 0.0
    %206 = vmatpush1.msra.mxu0 0.0
    %207 = vmatprep.subr.mxu0 0.0
    %208 = vmatpush1.msra.mxu0 0.0
    %209 = vmatprep.mubr.f32.mxu0 0.0
    %210 = vmatmul.mubr.f32.gmra.mrb[0].mxu0 %v143
    %v211 = vpop.f32.mrb[0].mxu0
    %v212 = vadd.f32 0.0, %v211
    %v213 = vpop.f32.mrb[0].mxu0
    %214 = vdwg.mxu0
    %v215 = vadd.f32 %v141, %v212
    %v216 = vtanh.pop %v215
    %v218 = vlaneseq
    %v219 = vshrl.u32 %v218, 7
    %v220 = vsub.s32 0, %v219
    %v221 = vrot.slane %v126, %v220
    %v223 = vmul.f32 %v221, %v216
    %v225 = vlaneseq
    %v226 = vshrl.u32 %v225, 7
    %v227 = vsub.s32 0, %v226
    %v228 = vrot.slane %v127, %v227
    %v230 = vadd.f32 %v228, %v223
    %232 = vrot.lane.b32.xlu0 %v230, 96
    %v233 = vpop.permute.xlu0 %232
    %v235 = vmul.f32 %v230, %v233
    %236 = vrot.lane.b32.xlu0 %v230, 64
    %v237 = vpop.permute.xlu0 %236
    %v239 = vmul.f32 %v139, %v237
    %v240 = vadd.f32 %v235, %v239
    %v241 = vtanh.pop %v240
    %242 = vrot.lane.b32.xlu0 %v230, 32
    %v243 = vpop.permute.xlu0 %242
    %v245 = vmul.f32 %v241, %v243
    %v246 = vld [vmem:[#allocation2 + $0x8] sm:$0xff]
    %v248 = vsel %vm142, %v245, 0
    %250 = vmatprep.subr.mxu0 0.0
    %251 = vmatpush1.msra.mxu0 %v122
    %252 = vmatprep.subr.mxu0 0.0
    %253 = vmatpush1.msra.mxu0 %v123
    %254 = vmatprep.subr.mxu0 0.0
    %255 = vmatpush1.msra.mxu0 %v124
    %256 = vmatprep.subr.mxu0 0.0
    %257 = vmatpush1.msra.mxu0 %v125
    %258 = vmatprep.subr.mxu0 0.0
    %259 = vmatpush1.msra.mxu0 0.0
    %260 = vmatprep.subr.mxu0 0.0
    %261 = vmatpush1.msra.mxu0 0.0
    %262 = vmatprep.subr.mxu0 0.0
    %263 = vmatpush1.msra.mxu0 0.0
    %264 = vmatprep.subr.mxu0 0.0
    %265 = vmatpush1.msra.mxu0 0.0
    %266 = vmatprep.subr.mxu0 0.0
    %267 = vmatpush1.msra.mxu0 0.0
    %268 = vmatprep.subr.mxu0 0.0
    %269 = vmatpush1.msra.mxu0 0.0
    %270 = vmatprep.subr.mxu0 0.0
    %271 = vmatpush1.msra.mxu0 0.0
    %272 = vmatprep.subr.mxu0 0.0
    %273 = vmatpush1.msra.mxu0 0.0
    %274 = vmatprep.subr.mxu0 0.0
    %275 = vmatpush1.msra.mxu0 0.0
    %276 = vmatprep.subr.mxu0 0.0
    %277 = vmatpush1.msra.mxu0 0.0
    %278 = vmatprep.subr.mxu0 0.0
    %279 = vmatpush1.msra.mxu0 0.0
    %280 = vmatprep.subr.mxu0 0.0
    %281 = vmatpush1.msra.mxu0 0.0
    %282 = vmatprep.subr.mxu0 0.0
    %283 = vmatpush1.msra.mxu0 0.0
    %284 = vmatprep.subr.mxu0 0.0
    %285 = vmatpush1.msra.mxu0 0.0
    %286 = vmatprep.subr.mxu0 0.0
    %287 = vmatpush1.msra.mxu0 0.0
    %288 = vmatprep.subr.mxu0 0.0
    %289 = vmatpush1.msra.mxu0 0.0
    %290 = vmatprep.subr.mxu0 0.0
    %291 = vmatpush1.msra.mxu0 0.0
    %292 = vmatprep.subr.mxu0 0.0
    %293 = vmatpush1.msra.mxu0 0.0
    %294 = vmatprep.subr.mxu0 0.0
    %295 = vmatpush1.msra.mxu0 0.0
    %296 = vmatprep.subr.mxu0 0.0
    %297 = vmatpush1.msra.mxu0 0.0
    %298 = vmatprep.subr.mxu0 0.0
    %299 = vmatpush1.msra.mxu0 0.0
    %300 = vmatprep.subr.mxu0 0.0
    %301 = vmatpush1.msra.mxu0 0.0
    %302 = vmatprep.subr.mxu0 0.0
    %303 = vmatpush1.msra.mxu0 0.0
    %304 = vmatprep.subr.mxu0 0.0
    %305 = vmatpush1.msra.mxu0 0.0
    %306 = vmatprep.subr.mxu0 0.0
    %307 = vmatpush1.msra.mxu0 0.0
    %308 = vmatprep.subr.mxu0 0.0
    %309 = vmatpush1.msra.mxu0 0.0
    %310 = vmatprep.subr.mxu0 0.0
    %311 = vmatpush1.msra.mxu0 0.0
    %312 = vmatprep.subr.mxu0 0.0
    %313 = vmatpush1.msra.mxu0 0.0
    %314 = vmatprep.mubr.f32.mxu0 0.0
    %315 = vmatmul.mubr.f32.gmra.mrb[0].mxu0 %v248
    %v316 = vpop.f32.mrb[0].mxu0
    %v317 = vadd.f32 0.0, %v316
    %v318 = vpop.f32.mrb[0].mxu0
    %319 = vdwg.mxu0
    %v320 = vadd.f32 %v246, %v317
    %v321 = vtanh.pop %v320
    %v322 = vmul.f32 %v221, %v321
    %v323 = vadd.f32 %v228, %v322
    %325 = vrot.lane.b32.xlu0 %v323, 96
    %v326 = vpop.permute.xlu0 %325
    %v328 = vmul.f32 %v323, %v326
    %329 = vrot.lane.b32.xlu0 %v323, 64
    %v330 = vpop.permute.xlu0 %329
    %v332 = vmul.f32 %v240, %v330
    %v333 = vadd.f32 %v328, %v332
    %v334 = vtanh.pop %v333
    %335 = vrot.lane.b32.xlu0 %v323, 32
    %v336 = vpop.permute.xlu0 %335
    %v338 = vmul.f32 %v334, %v336
    %v339 = vld [vmem:[#allocation2 + $0x10] sm:$0xff]
    %v341 = vsel %vm142, %v338, 0
    %343 = vmatprep.subr.mxu0 0.0
    %344 = vmatpush1.msra.mxu0 %v122
    %345 = vmatprep.subr.mxu0 0.0
    %346 = vmatpush1.msra.mxu0 %v123
    %347 = vmatprep.subr.mxu0 0.0
    %348 = vmatpush1.msra.mxu0 %v124
    %349 = vmatprep.subr.mxu0 0.0
    %350 = vmatpush1.msra.mxu0 %v125
    %351 = vmatprep.subr.mxu0 0.0
    %352 = vmatpush1.msra.mxu0 0.0
    %353 = vmatprep.subr.mxu0 0.0
    %354 = vmatpush1.msra.mxu0 0.0
    %355 = vmatprep.subr.mxu0 0.0
    %356 = vmatpush1.msra.mxu0 0.0
    %357 = vmatprep.subr.mxu0 0.0
    %358 = vmatpush1.msra.mxu0 0.0
    %359 = vmatprep.subr.mxu0 0.0
    %360 = vmatpush1.msra.mxu0 0.0
    %361 = vmatprep.subr.mxu0 0.0
    %362 = vmatpush1.msra.mxu0 0.0
    %363 = vmatprep.subr.mxu0 0.0
    %364 = vmatpush1.msra.mxu0 0.0
    %365 = vmatprep.subr.mxu0 0.0
    %366 = vmatpush1.msra.mxu0 0.0
    %367 = vmatprep.subr.mxu0 0.0
    %368 = vmatpush1.msra.mxu0 0.0
    %369 = vmatprep.subr.mxu0 0.0
    %370 = vmatpush1.msra.mxu0 0.0
    %371 = vmatprep.subr.mxu0 0.0
    %372 = vmatpush1.msra.mxu0 0.0
    %373 = vmatprep.subr.mxu0 0.0
    %374 = vmatpush1.msra.mxu0 0.0
    %375 = vmatprep.subr.mxu0 0.0
    %376 = vmatpush1.msra.mxu0 0.0
    %377 = vmatprep.subr.mxu0 0.0
    %378 = vmatpush1.msra.mxu0 0.0
    %379 = vmatprep.subr.mxu0 0.0
    %380 = vmatpush1.msra.mxu0 0.0
    %381 = vmatprep.subr.mxu0 0.0
    %382 = vmatpush1.msra.mxu0 0.0
    %383 = vmatprep.subr.mxu0 0.0
    %384 = vmatpush1.msra.mxu0 0.0
    %385 = vmatprep.subr.mxu0 0.0
    %386 = vmatpush1.msra.mxu0 0.0
    %387 = vmatprep.subr.mxu0 0.0
    %388 = vmatpush1.msra.mxu0 0.0
    %389 = vmatprep.subr.mxu0 0.0
    %390 = vmatpush1.msra.mxu0 0.0
    %391 = vmatprep.subr.mxu0 0.0
    %392 = vmatpush1.msra.mxu0 0.0
    %393 = vmatprep.subr.mxu0 0.0
    %394 = vmatpush1.msra.mxu0 0.0
    %395 = vmatprep.subr.mxu0 0.0
    %396 = vmatpush1.msra.mxu0 0.0
    %397 = vmatprep.subr.mxu0 0.0
    %398 = vmatpush1.msra.mxu0 0.0
    %399 = vmatprep.subr.mxu0 0.0
    %400 = vmatpush1.msra.mxu0 0.0
    %401 = vmatprep.subr.mxu0 0.0
    %402 = vmatpush1.msra.mxu0 0.0
    %403 = vmatprep.subr.mxu0 0.0
    %404 = vmatpush1.msra.mxu0 0.0
    %405 = vmatprep.subr.mxu0 0.0
    %406 = vmatpush1.msra.mxu0 0.0
    %407 = vmatprep.mubr.f32.mxu0 0.0
    %408 = vmatmul.mubr.f32.gmra.mrb[0].mxu0 %v341
    %v409 = vpop.f32.mrb[0].mxu0
    %v410 = vadd.f32 0.0, %v409
    %v411 = vpop.f32.mrb[0].mxu0
    %412 = vdwg.mxu0
    %v413 = vadd.f32 %v339, %v410
    %v414 = vtanh.pop %v413
    %v415 = vmul.f32 %v221, %v414
    %v416 = vadd.f32 %v228, %v415
    %418 = vrot.lane.b32.xlu0 %v416, 96
    %v419 = vpop.permute.xlu0 %418
    %v421 = vmul.f32 %v416, %v419
    %422 = vrot.lane.b32.xlu0 %v416, 64
    %v423 = vpop.permute.xlu0 %422
    %v425 = vmul.f32 %v333, %v423
    %v426 = vadd.f32 %v421, %v425
    %v427 = vtanh.pop %v426
    %428 = vrot.lane.b32.xlu0 %v416, 32
    %v429 = vpop.permute.xlu0 %428
    %v431 = vmul.f32 %v427, %v429
    %v432 = vld [vmem:[#allocation2 + $0x18] sm:$0xff]
    %v434 = vsel %vm142, %v431, 0
    %436 = vmatprep.subr.mxu0 0.0
    %437 = vmatpush1.msra.mxu0 %v122
    %438 = vmatprep.subr.mxu0 0.0
    %439 = vmatpush1.msra.mxu0 %v123
    %440 = vmatprep.subr.mxu0 0.0
    %441 = vmatpush1.msra.mxu0 %v124
    %442 = vmatprep.subr.mxu0 0.0
    %443 = vmatpush1.msra.mxu0 %v125
    %444 = vmatprep.subr.mxu0 0.0
    %445 = vmatpush1.msra.mxu0 0.0
    %446 = vmatprep.subr.mxu0 0.0
    %447 = vmatpush1.msra.mxu0 0.0
    %448 = vmatprep.subr.mxu0 0.0
    %449 = vmatpush1.msra.mxu0 0.0
    %450 = vmatprep.subr.mxu0 0.0
    %451 = vmatpush1.msra.mxu0 0.0
    %452 = vmatprep.subr.mxu0 0.0
    %453 = vmatpush1.msra.mxu0 0.0
    %454 = vmatprep.subr.mxu0 0.0
    %455 = vmatpush1.msra.mxu0 0.0
    %456 = vmatprep.subr.mxu0 0.0
    %457 = vmatpush1.msra.mxu0 0.0
    %458 = vmatprep.subr.mxu0 0.0
    %459 = vmatpush1.msra.mxu0 0.0
    %460 = vmatprep.subr.mxu0 0.0
    %461 = vmatpush1.msra.mxu0 0.0
    %462 = vmatprep.subr.mxu0 0.0
    %463 = vmatpush1.msra.mxu0 0.0
    %464 = vmatprep.subr.mxu0 0.0
    %465 = vmatpush1.msra.mxu0 0.0
    %466 = vmatprep.subr.mxu0 0.0
    %467 = vmatpush1.msra.mxu0 0.0
    %468 = vmatprep.subr.mxu0 0.0
    %469 = vmatpush1.msra.mxu0 0.0
    %470 = vmatprep.subr.mxu0 0.0
    %471 = vmatpush1.msra.mxu0 0.0
    %472 = vmatprep.subr.mxu0 0.0
    %473 = vmatpush1.msra.mxu0 0.0
    %474 = vmatprep.subr.mxu0 0.0
    %475 = vmatpush1.msra.mxu0 0.0
    %476 = vmatprep.subr.mxu0 0.0
    %477 = vmatpush1.msra.mxu0 0.0
    %478 = vmatprep.subr.mxu0 0.0
    %479 = vmatpush1.msra.mxu0 0.0
    %480 = vmatprep.subr.mxu0 0.0
    %481 = vmatpush1.msra.mxu0 0.0
    %482 = vmatprep.subr.mxu0 0.0
    %483 = vmatpush1.msra.mxu0 0.0
    %484 = vmatprep.subr.mxu0 0.0
    %485 = vmatpush1.msra.mxu0 0.0
    %486 = vmatprep.subr.mxu0 0.0
    %487 = vmatpush1.msra.mxu0 0.0
    %488 = vmatprep.subr.mxu0 0.0
    %489 = vmatpush1.msra.mxu0 0.0
    %490 = vmatprep.subr.mxu0 0.0
    %491 = vmatpush1.msra.mxu0 0.0
    %492 = vmatprep.subr.mxu0 0.0
    %493 = vmatpush1.msra.mxu0 0.0
    %494 = vmatprep.subr.mxu0 0.0
    %495 = vmatpush1.msra.mxu0 0.0
    %496 = vmatprep.subr.mxu0 0.0
    %497 = vmatpush1.msra.mxu0 0.0
    %498 = vmatprep.subr.mxu0 0.0
    %499 = vmatpush1.msra.mxu0 0.0
    %500 = vmatprep.mubr.f32.mxu0 0.0
    %501 = vmatmul.mubr.f32.gmra.mrb[0].mxu0 %v434
    %v502 = vpop.f32.mrb[0].mxu0
    %v503 = vadd.f32 0.0, %v502
    %v504 = vpop.f32.mrb[0].mxu0
    %505 = vdwg.mxu0
    %v506 = vadd.f32 %v432, %v503
    %v507 = vtanh.pop %v506
    %v508 = vmul.f32 %v221, %v507
    %v509 = vadd.f32 %v228, %v508
    %511 = vrot.lane.b32.xlu0 %v509, 96
    %v512 = vpop.permute.xlu0 %511
    %v514 = vmul.f32 %v509, %v512
    %515 = vrot.lane.b32.xlu0 %v509, 64
    %v516 = vpop.permute.xlu0 %515
    %v518 = vmul.f32 %v426, %v516
    %v519 = vadd.f32 %v514, %v518
    %v520 = vtanh.pop %v519
    %521 = vrot.lane.b32.xlu0 %v509, 32
    %v522 = vpop.permute.xlu0 %521
    %v524 = vmul.f32 %v520, %v522
    %v525 = vld [vmem:[#allocation2 + $0x20] sm:$0xff]
    %v527 = vsel %vm142, %v524, 0
    %529 = vmatprep.subr.mxu0 0.0
    %530 = vmatpush1.msra.mxu0 %v122
    %531 = vmatprep.subr.mxu0 0.0
    %532 = vmatpush1.msra.mxu0 %v123
    %533 = vmatprep.subr.mxu0 0.0
    %534 = vmatpush1.msra.mxu0 %v124
    %535 = vmatprep.subr.mxu0 0.0
    %536 = vmatpush1.msra.mxu0 %v125
    %537 = vmatprep.subr.mxu0 0.0
    %538 = vmatpush1.msra.mxu0 0.0
    %539 = vmatprep.subr.mxu0 0.0
    %540 = vmatpush1.msra.mxu0 0.0
    %541 = vmatprep.subr.mxu0 0.0
    %542 = vmatpush1.msra.mxu0 0.0
    %543 = vmatprep.subr.mxu0 0.0
    %544 = vmatpush1.msra.mxu0 0.0
    %545 = vmatprep.subr.mxu0 0.0
    %546 = vmatpush1.msra.mxu0 0.0
    %547 = vmatprep.subr.mxu0 0.0
    %548 = vmatpush1.msra.mxu0 0.0
    %549 = vmatprep.subr.mxu0 0.0
    %550 = vmatpush1.msra.mxu0 0.0
    %551 = vmatprep.subr.mxu0 0.0
    %552 = vmatpush1.msra.mxu0 0.0
    %553 = vmatprep.subr.mxu0 0.0
    %554 = vmatpush1.msra.mxu0 0.0
    %555 = vmatprep.subr.mxu0 0.0
    %556 = vmatpush1.msra.mxu0 0.0
    %557 = vmatprep.subr.mxu0 0.0
    %558 = vmatpush1.msra.mxu0 0.0
    %559 = vmatprep.subr.mxu0 0.0
    %560 = vmatpush1.msra.mxu0 0.0
    %561 = vmatprep.subr.mxu0 0.0
    %562 = vmatpush1.msra.mxu0 0.0
    %563 = vmatprep.subr.mxu0 0.0
    %564 = vmatpush1.msra.mxu0 0.0
    %565 = vmatprep.subr.mxu0 0.0
    %566 = vmatpush1.msra.mxu0 0.0
    %567 = vmatprep.subr.mxu0 0.0
    %568 = vmatpush1.msra.mxu0 0.0
    %569 = vmatprep.subr.mxu0 0.0
    %570 = vmatpush1.msra.mxu0 0.0
    %571 = vmatprep.subr.mxu0 0.0
    %572 = vmatpush1.msra.mxu0 0.0
    %573 = vmatprep.subr.mxu0 0.0
    %574 = vmatpush1.msra.mxu0 0.0
    %575 = vmatprep.subr.mxu0 0.0
    %576 = vmatpush1.msra.mxu0 0.0
    %577 = vmatprep.subr.mxu0 0.0
    %578 = vmatpush1.msra.mxu0 0.0
    %579 = vmatprep.subr.mxu0 0.0
    %580 = vmatpush1.msra.mxu0 0.0
    %581 = vmatprep.subr.mxu0 0.0
    %582 = vmatpush1.msra.mxu0 0.0
    %583 = vmatprep.subr.mxu0 0.0
    %584 = vmatpush1.msra.mxu0 0.0
    %585 = vmatprep.subr.mxu0 0.0
    %586 = vmatpush1.msra.mxu0 0.0
    %587 = vmatprep.subr.mxu0 0.0
    %588 = vmatpush1.msra.mxu0 0.0
    %589 = vmatprep.subr.mxu0 0.0
    %590 = vmatpush1.msra.mxu0 0.0
    %591 = vmatprep.subr.mxu0 0.0
    %592 = vmatpush1.msra.mxu0 0.0
    %593 = vmatprep.mubr.f32.mxu0 0.0
    %594 = vmatmul.mubr.f32.gmra.mrb[0].mxu0 %v527
    %v595 = vpop.f32.mrb[0].mxu0
    %v596 = vadd.f32 0.0, %v595
    %v597 = vpop.f32.mrb[0].mxu0
    %598 = vdwg.mxu0
    %v599 = vadd.f32 %v525, %v596
    %v600 = vtanh.pop %v599
    %v601 = vmul.f32 %v221, %v600
    %v602 = vadd.f32 %v228, %v601
    %604 = vrot.lane.b32.xlu0 %v602, 96
    %v605 = vpop.permute.xlu0 %604
    %v607 = vmul.f32 %v602, %v605
    %608 = vrot.lane.b32.xlu0 %v602, 64
    %v609 = vpop.permute.xlu0 %608
    %v611 = vmul.f32 %v519, %v609
    %v612 = vadd.f32 %v607, %v611
    %v613 = vtanh.pop %v612
    %614 = vrot.lane.b32.xlu0 %v602, 32
    %v615 = vpop.permute.xlu0 %614
    %v617 = vmul.f32 %v613, %v615
    %v618 = vld [vmem:[#allocation2 + $0x28] sm:$0xff]
    %v620 = vsel %vm142, %v617, 0
    %622 = vmatprep.subr.mxu0 0.0
    %623 = vmatpush1.msra.mxu0 %v122
    %624 = vmatprep.subr.mxu0 0.0
    %625 = vmatpush1.msra.mxu0 %v123
    %626 = vmatprep.subr.mxu0 0.0
    %627 = vmatpush1.msra.mxu0 %v124
    %628 = vmatprep.subr.mxu0 0.0
    %629 = vmatpush1.msra.mxu0 %v125
    %630 = vmatprep.subr.mxu0 0.0
    %631 = vmatpush1.msra.mxu0 0.0
    %632 = vmatprep.subr.mxu0 0.0
    %633 = vmatpush1.msra.mxu0 0.0
    %634 = vmatprep.subr.mxu0 0.0
    %635 = vmatpush1.msra.mxu0 0.0
    %636 = vmatprep.subr.mxu0 0.0
    %637 = vmatpush1.msra.mxu0 0.0
    %638 = vmatprep.subr.mxu0 0.0
    %639 = vmatpush1.msra.mxu0 0.0
    %640 = vmatprep.subr.mxu0 0.0
    %641 = vmatpush1.msra.mxu0 0.0
    %642 = vmatprep.subr.mxu0 0.0
    %643 = vmatpush1.msra.mxu0 0.0
    %644 = vmatprep.subr.mxu0 0.0
    %645 = vmatpush1.msra.mxu0 0.0
    %646 = vmatprep.subr.mxu0 0.0
    %647 = vmatpush1.msra.mxu0 0.0
    %648 = vmatprep.subr.mxu0 0.0
    %649 = vmatpush1.msra.mxu0 0.0
    %650 = vmatprep.subr.mxu0 0.0
    %651 = vmatpush1.msra.mxu0 0.0
    %652 = vmatprep.subr.mxu0 0.0
    %653 = vmatpush1.msra.mxu0 0.0
    %654 = vmatprep.subr.mxu0 0.0
    %655 = vmatpush1.msra.mxu0 0.0
    %656 = vmatprep.subr.mxu0 0.0
    %657 = vmatpush1.msra.mxu0 0.0
    %658 = vmatprep.subr.mxu0 0.0
    %659 = vmatpush1.msra.mxu0 0.0
    %660 = vmatprep.subr.mxu0 0.0
    %661 = vmatpush1.msra.mxu0 0.0
    %662 = vmatprep.subr.mxu0 0.0
    %663 = vmatpush1.msra.mxu0 0.0
    %664 = vmatprep.subr.mxu0 0.0
    %665 = vmatpush1.msra.mxu0 0.0
    %666 = vmatprep.subr.mxu0 0.0
    %667 = vmatpush1.msra.mxu0 0.0
    %668 = vmatprep.subr.mxu0 0.0
    %669 = vmatpush1.msra.mxu0 0.0
    %670 = vmatprep.subr.mxu0 0.0
    %671 = vmatpush1.msra.mxu0 0.0
    %672 = vmatprep.subr.mxu0 0.0
    %673 = vmatpush1.msra.mxu0 0.0
    %674 = vmatprep.subr.mxu0 0.0
    %675 = vmatpush1.msra.mxu0 0.0
    %676 = vmatprep.subr.mxu0 0.0
    %677 = vmatpush1.msra.mxu0 0.0
    %678 = vmatprep.subr.mxu0 0.0
    %679 = vmatpush1.msra.mxu0 0.0
    %680 = vmatprep.subr.mxu0 0.0
    %681 = vmatpush1.msra.mxu0 0.0
    %682 = vmatprep.subr.mxu0 0.0
    %683 = vmatpush1.msra.mxu0 0.0
    %684 = vmatprep.subr.mxu0 0.0
    %685 = vmatpush1.msra.mxu0 0.0
    %686 = vmatprep.mubr.f32.mxu0 0.0
    %687 = vmatmul.mubr.f32.gmra.mrb[0].mxu0 %v620
    %v688 = vpop.f32.mrb[0].mxu0
    %v689 = vadd.f32 0.0, %v688
    %v690 = vpop.f32.mrb[0].mxu0
    %691 = vdwg.mxu0
    %v692 = vadd.f32 %v618, %v689
    %v693 = vtanh.pop %v692
    %v694 = vmul.f32 %v221, %v693
    %v695 = vadd.f32 %v228, %v694
    %697 = vrot.lane.b32.xlu0 %v695, 96
    %v698 = vpop.permute.xlu0 %697
    %v700 = vmul.f32 %v695, %v698
    %701 = vrot.lane.b32.xlu0 %v695, 64
    %v702 = vpop.permute.xlu0 %701
    %v704 = vmul.f32 %v612, %v702
    %v705 = vadd.f32 %v700, %v704
    %v706 = vtanh.pop %v705
    %707 = vrot.lane.b32.xlu0 %v695, 32
    %v708 = vpop.permute.xlu0 %707
    %v710 = vmul.f32 %v706, %v708
    %v711 = vld [vmem:[#allocation2 + $0x30] sm:$0xff]
    %v713 = vsel %vm142, %v710, 0
    %715 = vmatprep.subr.mxu0 0.0
    %716 = vmatpush1.msra.mxu0 %v122
    %717 = vmatprep.subr.mxu0 0.0
    %718 = vmatpush1.msra.mxu0 %v123
    %719 = vmatprep.subr.mxu0 0.0
    %720 = vmatpush1.msra.mxu0 %v124
    %721 = vmatprep.subr.mxu0 0.0
    %722 = vmatpush1.msra.mxu0 %v125
    %723 = vmatprep.subr.mxu0 0.0
    %724 = vmatpush1.msra.mxu0 0.0
    %725 = vmatprep.subr.mxu0 0.0
    %726 = vmatpush1.msra.mxu0 0.0
    %727 = vmatprep.subr.mxu0 0.0
    %728 = vmatpush1.msra.mxu0 0.0
    %729 = vmatprep.subr.mxu0 0.0
    %730 = vmatpush1.msra.mxu0 0.0
    %731 = vmatprep.subr.mxu0 0.0
    %732 = vmatpush1.msra.mxu0 0.0
    %733 = vmatprep.subr.mxu0 0.0
    %734 = vmatpush1.msra.mxu0 0.0
    %735 = vmatprep.subr.mxu0 0.0
    %736 = vmatpush1.msra.mxu0 0.0
    %737 = vmatprep.subr.mxu0 0.0
    %738 = vmatpush1.msra.mxu0 0.0
    %739 = vmatprep.subr.mxu0 0.0
    %740 = vmatpush1.msra.mxu0 0.0
    %741 = vmatprep.subr.mxu0 0.0
    %742 = vmatpush1.msra.mxu0 0.0
    %743 = vmatprep.subr.mxu0 0.0
    %744 = vmatpush1.msra.mxu0 0.0
    %745 = vmatprep.subr.mxu0 0.0
    %746 = vmatpush1.msra.mxu0 0.0
    %747 = vmatprep.subr.mxu0 0.0
    %748 = vmatpush1.msra.mxu0 0.0
    %749 = vmatprep.subr.mxu0 0.0
    %750 = vmatpush1.msra.mxu0 0.0
    %751 = vmatprep.subr.mxu0 0.0
    %752 = vmatpush1.msra.mxu0 0.0
    %753 = vmatprep.subr.mxu0 0.0
    %754 = vmatpush1.msra.mxu0 0.0
    %755 = vmatprep.subr.mxu0 0.0
    %756 = vmatpush1.msra.mxu0 0.0
    %757 = vmatprep.subr.mxu0 0.0
    %758 = vmatpush1.msra.mxu0 0.0
    %759 = vmatprep.subr.mxu0 0.0
    %760 = vmatpush1.msra.mxu0 0.0
    %761 = vmatprep.subr.mxu0 0.0
    %762 = vmatpush1.msra.mxu0 0.0
    %763 = vmatprep.subr.mxu0 0.0
    %764 = vmatpush1.msra.mxu0 0.0
    %765 = vmatprep.subr.mxu0 0.0
    %766 = vmatpush1.msra.mxu0 0.0
    %767 = vmatprep.subr.mxu0 0.0
    %768 = vmatpush1.msra.mxu0 0.0
    %769 = vmatprep.subr.mxu0 0.0
    %770 = vmatpush1.msra.mxu0 0.0
    %771 = vmatprep.subr.mxu0 0.0
    %772 = vmatpush1.msra.mxu0 0.0
    %773 = vmatprep.subr.mxu0 0.0
    %774 = vmatpush1.msra.mxu0 0.0
    %775 = vmatprep.subr.mxu0 0.0
    %776 = vmatpush1.msra.mxu0 0.0
    %777 = vmatprep.subr.mxu0 0.0
    %778 = vmatpush1.msra.mxu0 0.0
    %779 = vmatprep.mubr.f32.mxu0 0.0
    %780 = vmatmul.mubr.f32.gmra.mrb[0].mxu0 %v713
    %v781 = vpop.f32.mrb[0].mxu0
    %v782 = vadd.f32 0.0, %v781
    %v783 = vpop.f32.mrb[0].mxu0
    %784 = vdwg.mxu0
    %v785 = vadd.f32 %v711, %v782
    %v786 = vtanh.pop %v785
    %v787 = vmul.f32 %v221, %v786
    %v788 = vadd.f32 %v228, %v787
    %790 = vrot.lane.b32.xlu0 %v788, 96
    %v791 = vpop.permute.xlu0 %790
    %v793 = vmul.f32 %v788, %v791
    %794 = vrot.lane.b32.xlu0 %v788, 64
    %v795 = vpop.permute.xlu0 %794
    %v797 = vmul.f32 %v705, %v795
    %v798 = vadd.f32 %v793, %v797
    %v799 = vtanh.pop %v798
    %800 = vrot.lane.b32.xlu0 %v788, 32
    %v801 = vpop.permute.xlu0 %800
    %v803 = vmul.f32 %v799, %v801
    %v804 = vld [vmem:[#allocation2 + $0x38] sm:$0xff]
    %v806 = vsel %vm142, %v803, 0
    %808 = vmatprep.subr.mxu0 0.0
    %809 = vmatpush1.msra.mxu0 %v122
    %810 = vmatprep.subr.mxu0 0.0
    %811 = vmatpush1.msra.mxu0 %v123
    %812 = vmatprep.subr.mxu0 0.0
    %813 = vmatpush1.msra.mxu0 %v124
    %814 = vmatprep.subr.mxu0 0.0
    %815 = vmatpush1.msra.mxu0 %v125
    %816 = vmatprep.subr.mxu0 0.0
    %817 = vmatpush1.msra.mxu0 0.0
    %818 = vmatprep.subr.mxu0 0.0
    %819 = vmatpush1.msra.mxu0 0.0
    %820 = vmatprep.subr.mxu0 0.0
    %821 = vmatpush1.msra.mxu0 0.0
    %822 = vmatprep.subr.mxu0 0.0
    %823 = vmatpush1.msra.mxu0 0.0
    %824 = vmatprep.subr.mxu0 0.0
    %825 = vmatpush1.msra.mxu0 0.0
    %826 = vmatprep.subr.mxu0 0.0
    %827 = vmatpush1.msra.mxu0 0.0
    %828 = vmatprep.subr.mxu0 0.0
    %829 = vmatpush1.msra.mxu0 0.0
    %830 = vmatprep.subr.mxu0 0.0
    %831 = vmatpush1.msra.mxu0 0.0
    %832 = vmatprep.subr.mxu0 0.0
    %833 = vmatpush1.msra.mxu0 0.0
    %834 = vmatprep.subr.mxu0 0.0
    %835 = vmatpush1.msra.mxu0 0.0
    %836 = vmatprep.subr.mxu0 0.0
    %837 = vmatpush1.msra.mxu0 0.0
    %838 = vmatprep.subr.mxu0 0.0
    %839 = vmatpush1.msra.mxu0 0.0
    %840 = vmatprep.subr.mxu0 0.0
    %841 = vmatpush1.msra.mxu0 0.0
    %842 = vmatprep.subr.mxu0 0.0
    %843 = vmatpush1.msra.mxu0 0.0
    %844 = vmatprep.subr.mxu0 0.0
    %845 = vmatpush1.msra.mxu0 0.0
    %846 = vmatprep.subr.mxu0 0.0
    %847 = vmatpush1.msra.mxu0 0.0
    %848 = vmatprep.subr.mxu0 0.0
    %849 = vmatpush1.msra.mxu0 0.0
    %850 = vmatprep.subr.mxu0 0.0
    %851 = vmatpush1.msra.mxu0 0.0
    %852 = vmatprep.subr.mxu0 0.0
    %853 = vmatpush1.msra.mxu0 0.0
    %854 = vmatprep.subr.mxu0 0.0
    %855 = vmatpush1.msra.mxu0 0.0
    %856 = vmatprep.subr.mxu0 0.0
    %857 = vmatpush1.msra.mxu0 0.0
    %858 = vmatprep.subr.mxu0 0.0
    %859 = vmatpush1.msra.mxu0 0.0
    %860 = vmatprep.subr.mxu0 0.0
    %861 = vmatpush1.msra.mxu0 0.0
    %862 = vmatprep.subr.mxu0 0.0
    %863 = vmatpush1.msra.mxu0 0.0
    %864 = vmatprep.subr.mxu0 0.0
    %865 = vmatpush1.msra.mxu0 0.0
    %866 = vmatprep.subr.mxu0 0.0
    %867 = vmatpush1.msra.mxu0 0.0
    %868 = vmatprep.subr.mxu0 0.0
    %869 = vmatpush1.msra.mxu0 0.0
    %870 = vmatprep.subr.mxu0 0.0
    %871 = vmatpush1.msra.mxu0 0.0
    %872 = vmatprep.mubr.f32.mxu0 0.0
    %873 = vmatmul.mubr.f32.gmra.mrb[0].mxu0 %v806
    %v874 = vpop.f32.mrb[0].mxu0
    %v875 = vadd.f32 0.0, %v874
    %v876 = vpop.f32.mrb[0].mxu0
    %877 = vdwg.mxu0
    %v878 = vadd.f32 %v804, %v875
    %v879 = vtanh.pop %v878
    %v880 = vmul.f32 %v221, %v879
    %v881 = vadd.f32 %v228, %v880
    %883 = vrot.lane.b32.xlu0 %v881, 96
    %v884 = vpop.permute.xlu0 %883
    %v886 = vmul.f32 %v881, %v884
    %887 = vrot.lane.b32.xlu0 %v881, 64
    %v888 = vpop.permute.xlu0 %887
    %v890 = vmul.f32 %v798, %v888
    %v891 = vadd.f32 %v886, %v890
    %v892 = vtanh.pop %v891
    %893 = vrot.lane.b32.xlu0 %v881, 32
    %v894 = vpop.permute.xlu0 %893
    %v896 = vmul.f32 %v892, %v894
    %v897 = vld [vmem:[%s6] sm:$0xff]
    %v898 = vld [vmem:[%s6 + $0x8] sm:$0xff]
    %v899 = vld [vmem:[%s6 + $0x10] sm:$0xff]
    %v900 = vld [vmem:[%s6 + $0x18] sm:$0xff]
    %v901 = vld [vmem:[%s7] sm:$0x1]
    %v903 = vlaneseq
    %v904 = vshrl.u32 %v903, 7
    %v905 = vsub.s32 0, %v904
    %v906 = vrot.slane %v901, %v905
    %v909 = vsel %vm142, %v896, 0
    %911 = vmatprep.subr.mxu0 0.0
    %912 = vmatpush1.msra.mxu0 %v897
    %913 = vmatprep.subr.mxu0 0.0
    %914 = vmatpush1.msra.mxu0 %v898
    %915 = vmatprep.subr.mxu0 0.0
    %916 = vmatpush1.msra.mxu0 %v899
    %917 = vmatprep.subr.mxu0 0.0
    %918 = vmatpush1.msra.mxu0 %v900
    %919 = vmatprep.subr.mxu0 0.0
    %920 = vmatpush1.msra.mxu0 0.0
    %921 = vmatprep.subr.mxu0 0.0
    %922 = vmatpush1.msra.mxu0 0.0
    %923 = vmatprep.subr.mxu0 0.0
    %924 = vmatpush1.msra.mxu0 0.0
    %925 = vmatprep.subr.mxu0 0.0
    %926 = vmatpush1.msra.mxu0 0.0
    %927 = vmatprep.subr.mxu0 0.0
    %928 = vmatpush1.msra.mxu0 0.0
    %929 = vmatprep.subr.mxu0 0.0
    %930 = vmatpush1.msra.mxu0 0.0
    %931 = vmatprep.subr.mxu0 0.0
    %932 = vmatpush1.msra.mxu0 0.0
    %933 = vmatprep.subr.mxu0 0.0
    %934 = vmatpush1.msra.mxu0 0.0
    %935 = vmatprep.subr.mxu0 0.0
    %936 = vmatpush1.msra.mxu0 0.0
    %937 = vmatprep.subr.mxu0 0.0
    %938 = vmatpush1.msra.mxu0 0.0
    %939 = vmatprep.subr.mxu0 0.0
    %940 = vmatpush1.msra.mxu0 0.0
    %941 = vmatprep.subr.mxu0 0.0
    %942 = vmatpush1.msra.mxu0 0.0
    %943 = vmatprep.subr.mxu0 0.0
    %944 = vmatpush1.msra.mxu0 0.0
    %945 = vmatprep.subr.mxu0 0.0
    %946 = vmatpush1.msra.mxu0 0.0
    %947 = vmatprep.subr.mxu0 0.0
    %948 = vmatpush1.msra.mxu0 0.0
    %949 = vmatprep.subr.mxu0 0.0
    %950 = vmatpush1.msra.mxu0 0.0
    %951 = vmatprep.subr.mxu0 0.0
    %952 = vmatpush1.msra.mxu0 0.0
    %953 = vmatprep.subr.mxu0 0.0
    %954 = vmatpush1.msra.mxu0 0.0
    %955 = vmatprep.subr.mxu0 0.0
    %956 = vmatpush1.msra.mxu0 0.0
    %957 = vmatprep.subr.mxu0 0.0
    %958 = vmatpush1.msra.mxu0 0.0
    %959 = vmatprep.subr.mxu0 0.0
    %960 = vmatpush1.msra.mxu0 0.0
    %961 = vmatprep.subr.mxu0 0.0
    %962 = vmatpush1.msra.mxu0 0.0
    %963 = vmatprep.subr.mxu0 0.0
    %964 = vmatpush1.msra.mxu0 0.0
    %965 = vmatprep.subr.mxu0 0.0
    %966 = vmatpush1.msra.mxu0 0.0
    %967 = vmatprep.subr.mxu0 0.0
    %968 = vmatpush1.msra.mxu0 0.0
    %969 = vmatprep.subr.mxu0 0.0
    %970 = vmatpush1.msra.mxu0 0.0
    %971 = vmatprep.subr.mxu0 0.0
    %972 = vmatpush1.msra.mxu0 0.0
    %973 = vmatprep.subr.mxu0 0.0
    %974 = vmatpush1.msra.mxu0 0.0
    %975 = vmatprep.mubr.f32.mxu0 0.0
    %976 = vmatmul.mubr.f32.gmra.mrb[0].mxu0 %v909
    %v977 = vpop.f32.mrb[0].mxu0
    %v978 = vadd.f32 %v906, %v977
    %v979 = vpop.f32.mrb[0].mxu0
    %980 = vdwg.mxu0
    %981 = vst [vmem:[#allocation3] sm:$0xff] %v978
    // Predicated region
    $region42: #{tpu_custom_call.1} parent=1 // pred_check
      _
    $region43: #{tpu_custom_call.1} parent=1 // pred_check_branch
      %983 = sbr.rel (0) target = $region45
    $region44: #{tpu_custom_call.1} parent=1 // pred_region
      %s985 = ssub.s32 128, 128
      %986 = vsyncadd [#allocation4], %s985
      %s988 = sshll.u32 [#allocation3], 4
      %s989 = int_to_ptr.vmem [resolvable:$true] %s988
      %991 = dma.vmem_to_hbm [thread:$0]  %s989, 128, %s10, [#allocation4]
    $region45: #{tpu_custom_call.1} parent=1 // pred_fallthru
      _
    // Predicated region
    $region46: #{tpu_custom_call.1} parent=1 // pred_check
      _
    $region47: #{tpu_custom_call.1} parent=1 // pred_check_branch
      %993 = sbr.rel (0) target = $region49
    $region48: #{tpu_custom_call.1} parent=1 // pred_region
      %994 = dma.done [#allocation4], 128
    $region49: #{tpu_custom_call.1} parent=1 // pred_fallthru
      _
    %995 = vsyncpa [#allocation4], 1

</llo_original>
